<compile_context>
chip_gen: v7x
topology: tpu7x:2x2x1
jax: 0.10.0
libtpu: 0.0.40
codegen_flags: <defaults>
</compile_context>

<pallas_src>
import math
import functools

import jax
import jax.numpy as jnp
from jax.experimental import pallas as pl
from jax.experimental.pallas import tpu as pltpu


# ------------------------------ linear (GEMM) kernels ------------------------------

def _linear_kernel(x_ref, w_ref, o_ref):
    # (tr, Din) @ (Din, Dout): bf16 MXU operands, f32 accumulation.
    o_ref[...] = jnp.dot(
        x_ref[...].astype(jnp.bfloat16), w_ref[...],
        preferred_element_type=jnp.float32).astype(o_ref.dtype)


def _linear_bias_kernel(x_ref, w_ref, b_ref, o_ref):
    y = jnp.dot(x_ref[...].astype(jnp.bfloat16), w_ref[...],
                preferred_element_type=jnp.float32) + b_ref[...]
    o_ref[...] = y.astype(o_ref.dtype)


def linear_pallas(x, w, bias=None, *, out_dtype, row_tile):
    """y[b, n, :] = x[b, n, :] @ w (+ bias).  `w` is expected in bf16."""
    B, N, Din = x.shape
    Dout = w.shape[1]
    tr = min(row_tile, N)
    assert N % tr == 0

    in_specs = [
        pl.BlockSpec((None, tr, Din), lambda b, r: (b, r, 0)),
        # Constant index_map -> weights fetched once and stay resident across the grid.
        # (For very large D, additionally set pipeline_mode=pl.Buffered(1) to drop the
        # second pipeline buffer.)
        pl.BlockSpec((Din, Dout), lambda b, r: (0, 0)),
    ]
    args = (x, w)
    kernel = _linear_kernel
    if bias is not None:
        in_specs.append(pl.BlockSpec((1, Dout), lambda b, r: (0, 0)))
        args = (x, w, bias.reshape(1, Dout).astype(jnp.float32))
        kernel = _linear_bias_kernel

    return pl.pallas_call(
        kernel,
        out_shape=jax.ShapeDtypeStruct((B, N, Dout), out_dtype),
        grid=(B, N // tr),
        in_specs=in_specs,
        out_specs=pl.BlockSpec((None, tr, Dout), lambda b, r: (b, r, 0)),
        compiler_params=pltpu.CompilerParams(
            dimension_semantics=("parallel", "parallel")),
    )(*args)


# ------------------------------ flash attention kernel ------------------------------

def _flash_attn_kernel(q_ref, k_ref, v_ref, o_ref, m_sc, l_sc, acc_sc, *, scale):
    ki = pl.program_id(2)

    @pl.when(ki == 0)
    def _init():
        m_sc[...] = jnp.full(m_sc.shape, -jnp.inf, jnp.float32)
        l_sc[...] = jnp.zeros(l_sc.shape, jnp.float32)
        acc_sc[...] = jnp.zeros(acc_sc.shape, jnp.float32)

    q = q_ref[...]        # (H, tq,  hd) bf16
    k = k_ref[...]        # (H, tkv, hd) bf16
    v = v_ref[...]        # (H, tkv, hd) bf16

    # All heads in one batched MXU matmul; contraction over head_dim, no explicit K^T.
    s = jnp.einsum("hqd,hkd->hqk", q, k,
                   preferred_element_type=jnp.float32) * scale      # (H, tq, tkv) f32

    # Online (streaming) softmax update, math kept in f32.
    m_prev = m_sc[...]
    m_new = jnp.maximum(m_prev, jnp.max(s, axis=-1, keepdims=True))  # (H, tq, 1)
    alpha = jnp.exp(m_prev - m_new)
    p = jnp.exp(s - m_new)                                           # (H, tq, tkv) f32

    l_sc[...] = alpha * l_sc[...] + jnp.sum(p, axis=-1, keepdims=True)
    acc_sc[...] = alpha * acc_sc[...] + jnp.einsum(
        "hqk,hkd->hqd", p.astype(v.dtype), v,
        preferred_element_type=jnp.float32)                          # (H, tq, hd)
    m_sc[...] = m_new

    @pl.when(ki == pl.num_programs(2) - 1)
    def _finalize():
        inv_l = pl.reciprocal(l_sc[...], approx=True)                # EUP slot, ~free
        o_ref[...] = (acc_sc[...] * inv_l).astype(o_ref.dtype)


def flash_attention_pallas(q, k, v, *, scale, q_tile, kv_tile):
    """q, k, v: (B, H, N, hd) head-major. Returns (B, H, N, hd)."""
    B, H, N, hd = q.shape
    tq = min(q_tile, N)
    tkv = min(kv_tile, N)
    assert N % tq == 0 and N % tkv == 0

    kernel = functools.partial(_flash_attn_kernel, scale=scale)
    return pl.pallas_call(
        kernel,
        out_shape=jax.ShapeDtypeStruct((B, H, N, hd), q.dtype),
        grid=(B, N // tq, N // tkv),
        in_specs=[
            pl.BlockSpec((None, H, tq, hd), lambda b, qi, ki: (b, 0, qi, 0)),
            pl.BlockSpec((None, H, tkv, hd), lambda b, qi, ki: (b, 0, ki, 0)),
            pl.BlockSpec((None, H, tkv, hd), lambda b, qi, ki: (b, 0, ki, 0)),
        ],
        out_specs=pl.BlockSpec((None, H, tq, hd), lambda b, qi, ki: (b, 0, qi, 0)),
        scratch_shapes=[
            pltpu.VMEM((H, tq, 1), jnp.float32),    # running max  m
            pltpu.VMEM((H, tq, 1), jnp.float32),    # running sum  l
            pltpu.VMEM((H, tq, hd), jnp.float32),   # running numerator
        ],
        compiler_params=pltpu.CompilerParams(
            dimension_semantics=("parallel", "parallel", "arbitrary")),
        # When scaling tiles up (256+ rows on v6e; smaller budget on v7x's 64 MiB VMEM),
        # also set vmem_limit_bytes here.
    )(q, k, v)


# ------------------------------ full module forward ------------------------------

def attention_pallas(x, w_qkv, w_proj, b_proj, heads, *,
                     q_tile=256, kv_tile=256, row_tile=256):
    B, N, D = x.shape
    assert D % heads == 0
    hd = D // heads
    scale = 1.0 / math.sqrt(hd)

    w_qkv_bf = w_qkv.astype(jnp.bfloat16)
    w_proj_bf = w_proj.astype(jnp.bfloat16)

    # 1) Fused QKV projection (one full-width GEMM per row tile).
    qkv = linear_pallas(x, w_qkv_bf, out_dtype=jnp.bfloat16, row_tile=row_tile)  # (B, N, 3D)

    # 2) Layout plumbing (plain XLA, not compute): split heads so the attention kernel
    #    consumes head-leading (H, tile, hd) blocks and needs no in-kernel relayouts.
    qkv = qkv.reshape(B, N, 3, heads, hd)
    q = qkv[:, :, 0].transpose(0, 2, 1, 3)     # (B, H, N, hd)
    k = qkv[:, :, 1].transpose(0, 2, 1, 3)
    v = qkv[:, :, 2].transpose(0, 2, 1, 3)

    # 3) Flash attention: online softmax over kv tiles, heads batched in the MXU.
    attn = flash_attention_pallas(q, k, v, scale=scale,
                                  q_tile=q_tile, kv_tile=kv_tile)   # (B, H, N, hd)

    # 4) Merge heads (layout plumbing) + output projection with bias.
    attn = attn.transpose(0, 2, 1, 3).reshape(B, N, D)              # (B, N, D) bf16
    return linear_pallas(attn, w_proj_bf, b_proj, out_dtype=x.dtype, row_tile=row_tile)


# ------------------------------ pure-JAX reference ------------------------------

def attention_ref(x, w_qkv, w_proj, b_proj, heads):
    """f32 reference matching the PyTorch forward exactly."""
    B, N, D = x.shape
    hd = D // heads
    qkv = x @ w_qkv                                           # (B, N, 3D)
    q, k, v = jnp.split(qkv, 3, axis=-1)

    def to_heads(t):                                          # b n (h d) -> b h n d
        return t.reshape(B, N, heads, hd).transpose(0, 2, 1, 3)

    q, k, v = to_heads(q), to_heads(k), to_heads(v)
    w = jnp.einsum("bhnd,bhmd->bhnm", q, k) / math.sqrt(hd)
    w = jax.nn.softmax(w, axis=-1)
    out = jnp.einsum("bhnm,bhmd->bhnd", w, v)
    out = out.transpose(0, 2, 1, 3).reshape(B, N, D)
    return out @ w_proj + b_proj


if __name__ == "__main__":
    # Small shapes; N=16 with 8-row tiles exercises the multi-tile online-softmax path.
    B, N, D, HEADS = 2, 16, 32, 8

    key = jax.random.PRNGKey(0)
    kx, k1, k2, k3 = jax.random.split(key, 4)

    x = jax.random.normal(kx, (B, N, D), dtype=jnp.float32)

    # Deterministic parameter init (mimics nn.Linear's U(-1/sqrt(in), 1/sqrt(in))).
    lim = 1.0 / math.sqrt(D)
    w_qkv = jax.random.uniform(k1, (D, 3 * D), jnp.float32, -lim, lim)
    w_proj = jax.random.uniform(k2, (D, D), jnp.float32, -lim, lim)
    b_proj = jax.random.uniform(k3, (D,), jnp.float32, -lim, lim)

    out = attention_pallas(x, w_qkv, w_proj, b_proj, HEADS,
                           q_tile=8, kv_tile=8, row_tile=8)
    out = jax.block_until_ready(out)

    ref = attention_ref(x, w_qkv, w_proj, b_proj, HEADS)
    assert out.shape == (B, N, D)
    max_err = jnp.max(jnp.abs(out.astype(jnp.float32) - ref))
    # bf16 MXU operands + approx reciprocal -> relaxed tolerance vs the f32 reference.
    assert jnp.allclose(out.astype(jnp.float32), ref, atol=5e-2, rtol=5e-2), (
        f"mismatch vs reference (max abs err {max_err})")

    print("KERNEL_OK")
</pallas_src>

<mosaic_0001>
module attributes {stable_mosaic.version = 11 : i64} {
  func.func @_linear_kernel(%arg0: i32, %arg1: i32, %arg2: memref<1x8x32xf32, #tpu.memory_space<vmem>>, %arg3: memref<32x96xbf16, #tpu.memory_space<vmem>>, %arg4: memref<1x8x96xbf16, #tpu.memory_space<vmem>>) attributes {dimension_semantics = [#tpu.dimension_semantics<parallel>, #tpu.dimension_semantics<parallel>], iteration_bounds = array<i64: 2, 2>, scalar_prefetch = 0 : i64, scratch_operands = 0 : i64, tpu.core_type = #tpu.core_type<tc>, window_params = [{transform_indices = @transform_0, window_bounds = array<i64: 1, 8, 32>}, {pipeline_mode = #tpu.pipeline_mode<synchronous>, transform_indices = @transform_1, window_bounds = array<i64: 32, 96>}, {transform_indices = @transform_2, window_bounds = array<i64: 1, 8, 96>}]} {
    %c0 = arith.constant 0 : index
    %c0_0 = arith.constant 0 : index
    %c0_1 = arith.constant 0 : index
    %0 = vector.load %arg2[%c0, %c0_0, %c0_1] : memref<1x8x32xf32, #tpu.memory_space<vmem>>, vector<1x8x32xf32>
    %1 = vector.shape_cast %0 : vector<1x8x32xf32> to vector<8x32xf32>
    %2 = arith.truncf %1 : vector<8x32xf32> to vector<8x32xbf16>
    %c0_2 = arith.constant 0 : index
    %c0_3 = arith.constant 0 : index
    %3 = vector.load %arg3[%c0_2, %c0_3] : memref<32x96xbf16, #tpu.memory_space<vmem>>, vector<32x96xbf16>
    %cst = arith.constant dense<0.000000e+00> : vector<8x96xf32>
    %4 = tpu.matmul %2, %3, %cst {dimension_numbers = #tpu.dot_dimension_numbers<[1], [0], [0], [1], [0, 0, 1, 1], [], []>} : vector<8x32xbf16>, vector<32x96xbf16>, vector<8x96xf32> -> vector<8x96xf32>
    %5 = arith.truncf %4 : vector<8x96xf32> to vector<8x96xbf16>
    %c0_4 = arith.constant 0 : index
    %c0_5 = arith.constant 0 : index
    %c0_6 = arith.constant 0 : index
    %6 = vector.load %arg4[%c0_4, %c0_5, %c0_6] : memref<1x8x96xbf16, #tpu.memory_space<vmem>>, vector<1x8x96xbf16>
    %7 = vector.shape_cast %6 : vector<1x8x96xbf16> to vector<8x96xbf16>
    %8 = vector.shape_cast %5 : vector<8x96xbf16> to vector<1x8x96xbf16>
    tpu.vector_store %arg4[%c0_4, %c0_5, %c0_6], %8 {strides = array<i32>} : memref<1x8x96xbf16, #tpu.memory_space<vmem>>, vector<1x8x96xbf16>,
    return
  }
  func.func @transform_0(%arg0: i32, %arg1: i32) -> (i32, i32, i32) {
    %c0_i32 = arith.constant 0 : i32
    %c0_i32_0 = arith.constant 0 : i32
    return %arg0, %arg1, %c0_i32 : i32, i32, i32
  }
  func.func @transform_1(%arg0: i32, %arg1: i32) -> (i32, i32) {
    %c0_i32 = arith.constant 0 : i32
    %c0_i32_0 = arith.constant 0 : i32
    %c0_i32_1 = arith.constant 0 : i32
    return %c0_i32, %c0_i32_0 : i32, i32
  }
  func.func @transform_2(%arg0: i32, %arg1: i32) -> (i32, i32, i32) {
    %c0_i32 = arith.constant 0 : i32
    %c0_i32_0 = arith.constant 0 : i32
    return %arg0, %arg1, %c0_i32 : i32, i32, i32
  }
}

</mosaic_0001>

<llo_original>
// kernel: tpu_custom_call.1
$region0: #{tpu_custom_call.1}
  #allocation0 [shape = 'u32[]', space=smem, size = 0x4, offset = 0x4, fixed_abs, tag = 'smem constant byte address 0x4 - core index']
  #allocation1 [shape = 'u32[144,128]{1,0:T(1,128)}', space=vmem, size = 0x12000, scoped, tag = 'internal scratch']
  %s0 = inlined_call_operand.hbm [shape: f32[2,16,32], index: 0, kind: input, shape index: {}]
  %s1 = inlined_call_operand.hbm [shape: bf16[32,96], index: 1, kind: input, shape index: {}]
  %s2 = inlined_call_operand.hbm [shape: bf16[2,16,96], index: 2, kind: output, shape index: {}]
  %s3 = sld [smem:[#allocation0]]
  $region49: #{tpu_custom_call.1} parent=0
    _
  %s5 = ssub.s32 1, %s3
  %s6 = scalar_select 0, %s5, %s3
  $region1: #{tpu_custom_call.1} parent=0
    #allocation2 [shape = 'u8[8192]{0}', space=vmem, size = 0x2000, scoped, tag = 'input window, operand 0']
    #allocation3 [shape = 's32[2]{0}', space=sflag, size = 0x8, scoped, tag = 'scoped memory for tpu_custom_call.1']
    #allocation4 [shape = 's32[2]{0}', space=sflag, size = 0x8, scoped, tag = 'scoped memory for tpu_custom_call.1']
    #allocation5 [shape = 'u8[8192]{0}', space=vmem, size = 0x2000, scoped, tag = 'input window, operand 1, single buffered']
    #allocation6 [shape = 's32[1]{0}', space=sflag, size = 0x4, scoped, tag = 'scoped memory for tpu_custom_call.1']
    #allocation7 [shape = 'u8[4096]{0}', space=vmem, size = 0x1000, scoped, tag = 'output window, operand 0']
    %7 = vsyncpa [#allocation3], 0
    %s8 = scalar_lea.sflag [#allocation3], 1
    %9 = vsyncpa %s8, 0
    %10 = vsyncpa [#allocation6], 0
    %11 = vsyncpa [#allocation4], 0
    %s12 = scalar_lea.sflag [#allocation4], 1
    %13 = vsyncpa %s12, 0
    loop: start=0, step=1, limit=6
    $region2: #{tpu_custom_call.1} parent=1 // loop_pre_header
      _
    $region3: #{tpu_custom_call.1} parent=1 // loop_header
      %s15 = sphi 0, %s19
      %p16 = scmp.ge.s32.totalorder %s15, 6
      %s22 = sphi 0, %s34
      %s23 = sphi 0, %s30
      %s24 = sphi 0, %s22
      %s25 = sphi 0, %s23
      %s26 = sphi 0, %s24
      %s27 = sphi 0, %s25
      %s39 = sphi 0, %s41
      %s42 = sphi 0, %s39
      %s43 = sphi 0, %s42
      %s59 = sphi 0, %s43
      %s63 = sphi 0, %s63
      %s65 = sphi 0, %s63
      %s66 = sphi 0, %s65
      %s80 = sphi 0, %s66
      %s88 = sphi 0, %s90
      %s91 = sphi 0, %s88
      %s92 = sphi 0, %s91
      %s108 = sphi 0, %s92
    $region4: #{tpu_custom_call.1} parent=1 // loop_header_branch
      %18 = sbr.rel (%p16) target = $region8
    $region5: #{tpu_custom_call.1} parent=1 // loop_body
      %s20 = ssub.s32 %s15, 1
      %s21 = ssub.s32 %s15, 2
      %s28 = sadd.s32 1, %s23
      %p29 = scmp.ge.s32.totalorder %s28, 2
      %s30 = scalar_select %p29, 0, %s28
      %s31 = sadd.s32 1, %s22
      %s32 = scalar_select %p29, %s31, %s22
      %p33 = scmp.ge.s32.totalorder %s32, 2
      %s34 = scalar_select %p33, 0, %s32
      %s35 = ssub.s32 %s22, %s34
      %s36 = ssub.s32 %s23, %s30
      %s37 = sor.u32 %s35, %s36
      %p38 = scmp.eq.s32.totalorder %s37, 0
      %s40 = sadd.s32 %s39, 1
      %s41 = scalar_select %p38, %s39, %s40
      %p44 = pneg %p38
      %p45 = scmp.eq.s32.totalorder %s15, 3
      %p46 = por %p44, %p45
      %p47 = scmp.ne.s32.totalorder %s39, %s42
      %p48 = scmp.eq.s32.totalorder %s15, 0
      %p49 = por %p47, %p48
      %p50 = scmp.ne.s32.totalorder %s39, %s42
      %p51 = scmp.eq.s32.totalorder %s20, 3
      %p52 = por %p50, %p51
      %p53 = scmp.ne.s32.totalorder %s42, %s43
      %p54 = scmp.eq.s32.totalorder %s20, 0
      %p55 = por %p53, %p54
      %p56 = scmp.ne.s32.totalorder %s42, %s43
      %p57 = scmp.eq.s32.totalorder %s21, 3
      %p58 = por %p56, %p57
      %p60 = scmp.ne.s32.totalorder %s43, %s59
      %p61 = scmp.eq.s32.totalorder %s21, 0
      %p62 = por %p60, %p61
      %s64 = sadd.s32 %s63, 1
      %p67 = scmp.eq.s32.totalorder %s15, 3
      %p68 = scmp.ne.s32.totalorder %s63, %s65
      %p69 = scmp.eq.s32.totalorder %s15, 0
      %p70 = por %p68, %p69
      %p71 = scmp.ne.s32.totalorder %s63, %s65
      %p72 = scmp.eq.s32.totalorder %s20, 3
      %p73 = por %p71, %p72
      %p74 = scmp.ne.s32.totalorder %s65, %s66
      %p75 = scmp.eq.s32.totalorder %s20, 0
      %p76 = por %p74, %p75
      %p77 = scmp.ne.s32.totalorder %s65, %s66
      %p78 = scmp.eq.s32.totalorder %s21, 3
      %p79 = por %p77, %p78
      %p81 = scmp.ne.s32.totalorder %s66, %s80
      %p82 = scmp.eq.s32.totalorder %s21, 0
      %p83 = por %p81, %p82
      %s84 = ssub.s32 %s22, %s34
      %s85 = ssub.s32 %s23, %s30
      %s86 = sor.u32 %s84, %s85
      %p87 = scmp.eq.s32.totalorder %s86, 0
      %s89 = sadd.s32 %s88, 1
      %s90 = scalar_select %p87, %s88, %s89
      %p93 = pneg %p87
      %p94 = scmp.eq.s32.totalorder %s15, 3
      %p95 = por %p93, %p94
      %p96 = scmp.ne.s32.totalorder %s88, %s91
      %p97 = scmp.eq.s32.totalorder %s15, 0
      %p98 = por %p96, %p97
      %p99 = scmp.ne.s32.totalorder %s88, %s91
      %p100 = scmp.eq.s32.totalorder %s20, 3
      %p101 = por %p99, %p100
      %p102 = scmp.ne.s32.totalorder %s91, %s92
      %p103 = scmp.eq.s32.totalorder %s20, 0
      %p104 = por %p102, %p103
      %p105 = scmp.ne.s32.totalorder %s91, %s92
      %p106 = scmp.eq.s32.totalorder %s21, 3
      %p107 = por %p105, %p106
      %p109 = scmp.ne.s32.totalorder %s92, %s108
      %p110 = scmp.eq.s32.totalorder %s21, 0
      %p111 = por %p109, %p110
      %p112 = scmp.le.s32.totalorder 1, %s15
      %p113 = scmp.lt.s32.totalorder %s15, 5
      %p114 = pnand %p112, %p113
      %p115 = pneg %p114
      // Predicated region
      $region9: #{tpu_custom_call.1} parent=5 // pred_check
        _
      $region10: #{tpu_custom_call.1} parent=5 // pred_check_branch
        %117 = sbr.rel (%p114) target = $region12
      $region11: #{tpu_custom_call.1} parent=5 // pred_region
        %s118 = ssub.s32 %s15, 1
        // Predicated region
        $region13: #{tpu_custom_call.1} parent=11 // pred_check
          %p119 = pneg %p76
        $region14: #{tpu_custom_call.1} parent=11 // pred_check_branch
          %121 = sbr.rel (%p119) target = $region16
        $region15: #{tpu_custom_call.1} parent=11 // pred_region
          %s123 = ssub.s32 256, 256
          %124 = vsyncadd [#allocation6], %s123
          %s125 = sshll.u32 [#allocation5], 4
          %s126 = int_to_ptr.vmem [resolvable:$true] %s125
          %131 = dma.hbm_to_vmem [thread:$0]  %s1, 256, %s126, [#allocation6], 64, 64, 4
        $region16: #{tpu_custom_call.1} parent=11 // pred_fallthru
          _
      $region12: #{tpu_custom_call.1} parent=5 // pred_fallthru
        _
      %p132 = scmp.lt.s32.totalorder %s15, 4
      // Predicated region
      $region17: #{tpu_custom_call.1} parent=5 // pred_check
        %p133 = pneg %p132
      $region18: #{tpu_custom_call.1} parent=5 // pred_check_branch
        %135 = sbr.rel (%p133) target = $region20
      $region19: #{tpu_custom_call.1} parent=5 // pred_region
        // Predicated region
        $region21: #{tpu_custom_call.1} parent=19 // pred_check
          %p136 = pneg %p49
        $region22: #{tpu_custom_call.1} parent=19 // pred_check_branch
          %138 = sbr.rel (%p136) target = $region24
        $region23: #{tpu_custom_call.1} parent=19 // pred_region
          %s139 = sand.u32 %s39, 1
          %s140 = scalar_lea.sflag [#allocation3], %s139
          %s141 = sand.u32 %s39, 1
          %s142 = smul.addr %s141, 8
          %s143 = scalar_lea.vmem [#allocation2], %s142
          %s145 = ssub.s32 128, 128
          %146 = vsyncadd %s140, %s145
          %s147 = smul.addr %s22, 2
          %s148 = sadd.s32 %s23, %s147
          %s149 = smul.addr %s148, 128
          %s150 = scalar_lea.hbm %s0, %s149
          %s152 = sshll.u32 %s143, 4
          %s153 = int_to_ptr.vmem [resolvable:$true] %s152
          %155 = dma.hbm_to_vmem [thread:$0]  %s150, 128, %s153, %s140
        $region24: #{tpu_custom_call.1} parent=19 // pred_fallthru
          _
      $region20: #{tpu_custom_call.1} parent=5 // pred_fallthru
        _
      %p156 = scmp.le.s32.totalorder 1, %s15
      %p157 = scmp.lt.s32.totalorder %s15, 5
      %p158 = pnand %p156, %p157
      %p159 = pneg %p158
      // Predicated region
      $region25: #{tpu_custom_call.1} parent=5 // pred_check
        _
      $region26: #{tpu_custom_call.1} parent=5 // pred_check_branch
        %161 = sbr.rel (%p158) target = $region28
      $region27: #{tpu_custom_call.1} parent=5 // pred_region
        %s162 = ssub.s32 %s15, 1
        %s163 = sand.u32 %s42, 1
        %s164 = scalar_lea.sflag [#allocation3], %s163
        %s165 = sand.u32 %s42, 1
        %s166 = smul.addr %s165, 8
        %s167 = scalar_lea.vmem [#allocation2], %s166
        // Predicated region
        $region29: #{tpu_custom_call.1} parent=27 // pred_check
          %p168 = pneg %p55
        $region30: #{tpu_custom_call.1} parent=27 // pred_check_branch
          %170 = sbr.rel (%p168) target = $region32
        $region31: #{tpu_custom_call.1} parent=27 // pred_region
          %171 = dma.done %s164, 128
        $region32: #{tpu_custom_call.1} parent=27 // pred_fallthru
          _
        // Predicated region
        $region33: #{tpu_custom_call.1} parent=27 // pred_check
          %p172 = pneg %p76
        $region34: #{tpu_custom_call.1} parent=27 // pred_check_branch
          %174 = sbr.rel (%p172) target = $region36
        $region35: #{tpu_custom_call.1} parent=27 // pred_region
          %175 = dma.done [#allocation6], 256
        $region36: #{tpu_custom_call.1} parent=27 // pred_fallthru
          _
        %s176 = sand.u32 %s42, 1
        %s177 = scalar_lea.sflag [#allocation3], %s176
        %s178 = sand.u32 %s42, 1
        %s179 = smul.addr %s178, 8
        %s180 = scalar_lea.vmem [#allocation2], %s179
        %p181 = pneg %p55
        %p182 = pneg %p52
        %p183 = pneg %p76
        %p184 = pneg %p73
        %p185 = pneg %p104
        %p186 = pneg %p101
        %s187 = sand.u32 %s91, 1
        %s188 = scalar_lea.sflag [#allocation4], %s187
        %s189 = sand.u32 %s91, 1
        %s190 = smul.addr %s189, 4
        %s191 = scalar_lea.vmem [#allocation7], %s190
        %v193 = vld [vmem:[%s167] sm:$0xff]
        %v194 = vpack.c.bf16 %v193, %v193
        %v195 = vld [vmem:[#allocation5] sm:$0xf]
        %v196 = vld [vmem:[#allocation5 + $0x4] sm:$0xf]
        %v197 = vld [vmem:[#allocation5 + $0x8] sm:$0xf]
        %v198 = vld [vmem:[#allocation5 + $0xc] sm:$0xf]
        %v203 = vunpack.c.l.b16 %v195
        %v204 = vunpack.c.l.b16 %v196
        %v205 = vunpack.c.l.b16 %v197
        %v206 = vunpack.c.l.b16 %v198
        %v207 = vpack.c.b16 %v204, %v203
        %v208 = vpack.c.b16 %v206, %v205
        %vm211 = vcmask 261120
        %v213 = vsel %vm211, %v194, 0
        %215 = vmatprep.subr.bf16.mxu0 0
        %216 = vmatpush1.bf16.msra.mxu0 %v207
        %217 = vmatprep.subr.bf16.mxu0 0
        %218 = vmatpush1.bf16.msra.mxu0 %v208
        %219 = vmatprep.subr.bf16.mxu0 0
        %220 = vmatpush1.bf16.msra.mxu0 0
        %221 = vmatprep.subr.bf16.mxu0 0
        %222 = vmatpush1.bf16.msra.mxu0 0
        %223 = vmatprep.subr.bf16.mxu0 0
        %224 = vmatpush1.bf16.msra.mxu0 0
        %225 = vmatprep.subr.bf16.mxu0 0
        %226 = vmatpush1.bf16.msra.mxu0 0
        %227 = vmatprep.subr.bf16.mxu0 0
        %228 = vmatpush1.bf16.msra.mxu0 0
        %229 = vmatprep.subr.bf16.mxu0 0
        %230 = vmatpush1.bf16.msra.mxu0 0
        %231 = vmatprep.subr.bf16.mxu0 0
        %232 = vmatpush1.bf16.msra.mxu0 0
        %233 = vmatprep.subr.bf16.mxu0 0
        %234 = vmatpush1.bf16.msra.mxu0 0
        %235 = vmatprep.subr.bf16.mxu0 0
        %236 = vmatpush1.bf16.msra.mxu0 0
        %237 = vmatprep.subr.bf16.mxu0 0
        %238 = vmatpush1.bf16.msra.mxu0 0
        %239 = vmatprep.subr.bf16.mxu0 0
        %240 = vmatpush1.bf16.msra.mxu0 0
        %241 = vmatprep.subr.bf16.mxu0 0
        %242 = vmatpush1.bf16.msra.mxu0 0
        %243 = vmatprep.subr.bf16.mxu0 0
        %244 = vmatpush1.bf16.msra.mxu0 0
        %245 = vmatprep.subr.bf16.mxu0 0
        %246 = vmatpush1.bf16.msra.mxu0 0
        %247 = vmatprep.mubr.bf16.mxu0 0
        %248 = vmatmul.mubr.bf16.gmra.mrb[0].mxu0 %v213
        %v249 = vpop.f32.mrb[0].mxu0
        %v250 = vadd.f32 0.0, %v249
        %v251 = vpop.f32.mrb[0].mxu0
        %v252 = vpop.f32.mrb[0].mxu0
        %v253 = vpop.f32.mrb[0].mxu0
        %254 = vdwg.mxu0
        %v255 = vpack.c.bf16 %v250, %v250
        %vm256 = vcmask 781312
        %257 = vst.msk [vmem:[%s191] sm:$0xf] %vm256, %v255
        %s258 = sand.u32 %s91, 1
        %s259 = scalar_lea.sflag [#allocation4], %s258
        %s260 = sand.u32 %s91, 1
        %s261 = smul.addr %s260, 4
        %s262 = scalar_lea.vmem [#allocation7], %s261
        // Predicated region
        $region37: #{tpu_custom_call.1} parent=27 // pred_check
          %p263 = pneg %p101
        $region38: #{tpu_custom_call.1} parent=27 // pred_check_branch
          %265 = sbr.rel (%p263) target = $region40
        $region39: #{tpu_custom_call.1} parent=27 // pred_region
          %s267 = ssub.s32 64, 64
          %268 = vsyncadd %s259, %s267
          %s269 = smul.addr %s24, 2
          %s270 = sadd.s32 %s25, %s269
          %s271 = smul.addr %s270, 64
          %s272 = scalar_lea.hbm %s2, %s271
          %s274 = sshll.u32 %s262, 4
          %s275 = int_to_ptr.vmem [resolvable:$true] %s274
          %277 = dma.vmem_to_hbm [thread:$0]  %s275, 64, %s272, %s259
        $region40: #{tpu_custom_call.1} parent=27 // pred_fallthru
          _
      $region28: #{tpu_custom_call.1} parent=5 // pred_fallthru
        _
      %p278 = scmp.le.s32.totalorder 2, %s15
      // Predicated region
      $region41: #{tpu_custom_call.1} parent=5 // pred_check
        %p279 = pneg %p278
      $region42: #{tpu_custom_call.1} parent=5 // pred_check_branch
        %281 = sbr.rel (%p279) target = $region44
      $region43: #{tpu_custom_call.1} parent=5 // pred_region
        %s282 = ssub.s32 %s15, 2
        // Predicated region
        $region45: #{tpu_custom_call.1} parent=43 // pred_check
          %p283 = pneg %p107
        $region46: #{tpu_custom_call.1} parent=43 // pred_check_branch
          %285 = sbr.rel (%p283) target = $region48
        $region47: #{tpu_custom_call.1} parent=43 // pred_region
          %s286 = sand.u32 %s92, 1
          %s287 = scalar_lea.sflag [#allocation4], %s286
          %s288 = sand.u32 %s92, 1
          %s289 = smul.addr %s288, 4
          %s290 = scalar_lea.vmem [#allocation7], %s289
          %291 = dma.done %s287, 64
        $region48: #{tpu_custom_call.1} parent=43 // pred_fallthru
          _
      $region44: #{tpu_custom_call.1} parent=5 // pred_fallthru
        _
    $region6: #{tpu_custom_call.1} parent=1 // loop_footer
      %s19 = sadd.s32 1, %s15
    $region7: #{tpu_custom_call.1} parent=1 // loop_footer_branch
      %14 = sbr.rel target = $region3
    $region8: #{tpu_custom_call.1} parent=1 // loop_exit
      _
    %292 = vsyncpa [#allocation3], 1
    %s293 = scalar_lea.sflag [#allocation3], 1
    %294 = vsyncpa %s293, 1
    %295 = vsyncpa [#allocation6], 1
    %296 = vsyncpa [#allocation4], 1
    %s297 = scalar_lea.sflag [#allocation4], 1
    %298 = vsyncpa %s297, 1

</llo_original>
